<compile_context>
chip_gen: v7x
topology: tpu7x:2x2x1
jax: 0.10.0
libtpu: 0.0.40
codegen_flags: <defaults>
</compile_context>

<pallas_src>
import functools

import jax
import jax.numpy as jnp
from jax import lax
from jax.experimental import pallas as pl
from jax.experimental.pallas import tpu as pltpu

BN_EPS = 1e-5
HEAD_PAD = 128   # lane-dense width of the fused head matmul and of the output


def _full_spec(shape):
    """Full-array VMEM block spec with a properly-bound index map."""
    nd = len(shape)

    def index_map(*_):
        return (0,) * nd

    return pl.BlockSpec(shape, index_map)


def dueling_kernel(x_ref, w1_ref, w2_ref, wh_ref, slab_ref, out_ref,
                   *, action_size, h1_units, h2_units, mxu_dtype):
    A, H1, H2 = action_size, h1_units, h2_units

    # ---- packed (8, 128) parameter slab: static row/lane slices -------------
    b1 = slab_ref[0:1, :H1]
    g1 = slab_ref[1:2, :H1]
    be1 = slab_ref[2:3, :H1]
    b2 = slab_ref[3:4, :H2]
    g2 = slab_ref[4:5, :H2]
    be2 = slab_ref[5:6, :H2]
    bh = slab_ref[6:7, :]                       # fused head bias (1, HEAD_PAD)

    x = x_ref[...].astype(mxu_dtype)

    # ---- fc1 + ReLU + BatchNorm1d (training mode: biased batch stats) -------
    h1 = jnp.dot(x, w1_ref[...], preferred_element_type=jnp.float32) + b1
    h1 = jnp.maximum(h1, 0.0)
    mu1 = jnp.mean(h1, axis=0, keepdims=True)
    c1 = h1 - mu1                                # centered once, reused
    var1 = jnp.mean(c1 * c1, axis=0, keepdims=True)
    h1 = c1 * lax.rsqrt(var1 + BN_EPS) * g1 + be1

    # ---- fc2 + ReLU + BatchNorm1d -------------------------------------------
    h2 = jnp.dot(h1.astype(mxu_dtype), w2_ref[...],
                 preferred_element_type=jnp.float32) + b2
    h2 = jnp.maximum(h2, 0.0)
    mu2 = jnp.mean(h2, axis=0, keepdims=True)
    c2 = h2 - mu2
    var2 = jnp.mean(c2 * c2, axis=0, keepdims=True)
    h2 = c2 * lax.rsqrt(var2 + BN_EPS) * g2 + be2

    # ---- fused dueling heads: one matmul, one tanh ---------------------------
    # columns [0, A) = advantage head, column A = value head, rest zero-padded
    # (zero weight + zero bias -> tanh(0) == 0 exactly, exploited below).
    heads = jnp.tanh(jnp.dot(h2.astype(mxu_dtype), wh_ref[...],
                             preferred_element_type=jnp.float32) + bh)  # (B, 128)

    col = lax.broadcasted_iota(jnp.int32, (1, HEAD_PAD), 1)
    val = jnp.sum(jnp.where(col == A, heads, 0.0), axis=1, keepdims=True)
    total = jnp.sum(heads, axis=1, keepdims=True)        # = sum(adv) + val
    adv_mean = (total - val) * (1.0 / A)

    # Lane-dense full-width store; columns >= A are don't-care (sliced outside).
    out_ref[...] = (val - adv_mean) + heads


def pack_params(params, *, mxu_dtype=jnp.float32):
    """Build kernel-ready arrays once (fused head weight, packed param slab)."""
    H1 = params["w1"].shape[1]
    H2 = params["w2"].shape[1]
    A = params["wa"].shape[1]
    assert A + 1 <= HEAD_PAD

    # fused, lane-padded head weight
    wh = jnp.zeros((H2, HEAD_PAD), jnp.float32)
    wh = wh.at[:, :A].set(params["wa"]).at[:, A:A + 1].set(params["wv"])

    # fused head bias
    bh = jnp.zeros((HEAD_PAD,), jnp.float32)
    bh = bh.at[:A].set(params["ba"].reshape(-1))
    bh = bh.at[A].set(params["bv"].reshape(-1)[0])

    # single (8, 128) slab for all small per-feature vectors
    slab = jnp.zeros((8, 128), jnp.float32)
    slab = slab.at[0, :H1].set(params["b1"].reshape(-1))
    slab = slab.at[1, :H1].set(params["g1"].reshape(-1))
    slab = slab.at[2, :H1].set(params["be1"].reshape(-1))
    slab = slab.at[3, :H2].set(params["b2"].reshape(-1))
    slab = slab.at[4, :H2].set(params["g2"].reshape(-1))
    slab = slab.at[5, :H2].set(params["be2"].reshape(-1))
    slab = slab.at[6, :].set(bh)

    return {
        "w1": params["w1"].astype(mxu_dtype),
        "w2": params["w2"].astype(mxu_dtype),
        "wh": wh.astype(mxu_dtype),
        "slab": slab,
        "action_size": A,
        "h1_units": H1,
        "h2_units": H2,
        "mxu_dtype": mxu_dtype,
    }


def dueling_forward(x, packed):
    """x: (B, state_size) float32; packed: output of pack_params."""
    B = x.shape[0]
    A = packed["action_size"]

    kernel = functools.partial(
        dueling_kernel,
        action_size=A,
        h1_units=packed["h1_units"],
        h2_units=packed["h2_units"],
        mxu_dtype=packed["mxu_dtype"],
    )
    args = (x, packed["w1"], packed["w2"], packed["wh"], packed["slab"])

    out_pad = pl.pallas_call(
        kernel,
        out_shape=jax.ShapeDtypeStruct((B, HEAD_PAD), jnp.float32),
        grid=(),
        in_specs=[_full_spec(a.shape) for a in args],
        out_specs=_full_spec((B, HEAD_PAD)),
        compiler_params=pltpu.CompilerParams(
            vmem_limit_bytes=32 * 1024 * 1024),   # ample headroom, safe on v5e-v7x
    )(*args)
    return out_pad[:, :A]


# ----------------------------- init + reference ------------------------------

def _orthogonal(key, out_f, in_f, gain):
    """Deterministic orthogonal init matching nn.init.orthogonal_ semantics."""
    rows, cols = out_f, in_f
    flat = jax.random.normal(key, (max(rows, cols), min(rows, cols)), jnp.float32)
    q, r = jnp.linalg.qr(flat)
    q = q * jnp.sign(jnp.diag(r))
    if rows < cols:
        q = q.T
    return gain * q[:rows, :cols]          # (out_f, in_f) — PyTorch layout


def init_params(state_size, action_size, fc_units=(64, 64), seed=0):
    gain = float(jnp.sqrt(2.0))            # calculate_gain('relu')
    keys = jax.random.split(jax.random.PRNGKey(seed), 4)
    h1, h2 = fc_units[0], fc_units[-1]
    # weights stored transposed (in, out) for the kernel; biases as (1, out)
    w1 = _orthogonal(keys[0], h1, state_size, gain).T
    w2 = _orthogonal(keys[1], h2, h1, gain).T
    wv = _orthogonal(keys[2], 1, h2, gain).T
    wa = _orthogonal(keys[3], action_size, h2, gain).T
    return {
        "w1": w1, "b1": jnp.zeros((1, h1), jnp.float32),
        "g1": jnp.ones((1, h1), jnp.float32), "be1": jnp.zeros((1, h1), jnp.float32),
        "w2": w2, "b2": jnp.zeros((1, h2), jnp.float32),
        "g2": jnp.ones((1, h2), jnp.float32), "be2": jnp.zeros((1, h2), jnp.float32),
        "wv": wv, "bv": jnp.zeros((1, 1), jnp.float32),
        "wa": wa, "ba": jnp.zeros((1, action_size), jnp.float32),
    }


def reference_forward(x, p):
    """Pure-JAX (f32) reference with identical semantics."""
    h = jnp.maximum(x @ p["w1"] + p["b1"], 0.0)
    mu, var = jnp.mean(h, 0, keepdims=True), jnp.var(h, 0, keepdims=True)
    h = (h - mu) / jnp.sqrt(var + BN_EPS) * p["g1"] + p["be1"]
    h = jnp.maximum(h @ p["w2"] + p["b2"], 0.0)
    mu, var = jnp.mean(h, 0, keepdims=True), jnp.var(h, 0, keepdims=True)
    h = (h - mu) / jnp.sqrt(var + BN_EPS) * p["g2"] + p["be2"]
    adv = jnp.tanh(h @ p["wa"] + p["ba"])
    val = jnp.tanh(h @ p["wv"] + p["bv"])
    return val + adv - jnp.mean(adv, 1, keepdims=True)


if __name__ == "__main__":
    state_size, action_size, batch = 37, 4, 128   # batch >= 128 fills MXU rows
    params = init_params(state_size, action_size, fc_units=(64, 64), seed=0)
    x = jax.random.normal(jax.random.PRNGKey(0), (batch, state_size), jnp.float32)

    ref = reference_forward(x, params)

    # f32 MXU operands: tight check against the f32 reference.
    packed_f32 = pack_params(params, mxu_dtype=jnp.float32)
    out_f32 = jax.block_until_ready(dueling_forward(x, packed_f32))
    assert out_f32.shape == (batch, action_size)
    assert jnp.allclose(out_f32, ref, atol=1e-4, rtol=1e-4), "f32 mismatch vs reference"

    # bf16 MXU operands (preferred on v6e/v7x: ~3x fewer MXU passes), f32 accumulation
    # and f32 BN/tanh. Looser tolerance vs the f32 reference.
    packed_bf16 = pack_params(params, mxu_dtype=jnp.bfloat16)
    out_bf16 = jax.block_until_ready(dueling_forward(x, packed_bf16))
    assert out_bf16.shape == (batch, action_size)
    assert jnp.allclose(out_bf16, ref, atol=1e-1, rtol=1e-1), "bf16 mismatch vs reference"

    print("KERNEL_OK")
</pallas_src>

<mosaic_0001>
module attributes {stable_mosaic.version = 11 : i64} {
  func.func @dueling_kernel(%arg0: memref<128x37xf32, #tpu.memory_space<vmem>>, %arg1: memref<37x64xf32, #tpu.memory_space<vmem>>, %arg2: memref<64x64xf32, #tpu.memory_space<vmem>>, %arg3: memref<64x128xf32, #tpu.memory_space<vmem>>, %arg4: memref<8x128xf32, #tpu.memory_space<vmem>>, %arg5: memref<128x128xf32, #tpu.memory_space<vmem>>) attributes {dimension_semantics = [], scalar_prefetch = 0 : i64, scratch_operands = 0 : i64, tpu.core_type = #tpu.core_type<tc>} {
    %c0 = arith.constant 0 : index
    %c0_0 = arith.constant 0 : index
    %0 = vector.load %arg4[%c0, %c0_0] : memref<8x128xf32, #tpu.memory_space<vmem>>, vector<1x64xf32>
    %c1 = arith.constant 1 : index
    %c0_1 = arith.constant 0 : index
    %1 = vector.load %arg4[%c1, %c0_1] : memref<8x128xf32, #tpu.memory_space<vmem>>, vector<1x64xf32>
    %c2 = arith.constant 2 : index
    %c0_2 = arith.constant 0 : index
    %2 = vector.load %arg4[%c2, %c0_2] : memref<8x128xf32, #tpu.memory_space<vmem>>, vector<1x64xf32>
    %c3 = arith.constant 3 : index
    %c0_3 = arith.constant 0 : index
    %3 = vector.load %arg4[%c3, %c0_3] : memref<8x128xf32, #tpu.memory_space<vmem>>, vector<1x64xf32>
    %c4 = arith.constant 4 : index
    %c0_4 = arith.constant 0 : index
    %4 = vector.load %arg4[%c4, %c0_4] : memref<8x128xf32, #tpu.memory_space<vmem>>, vector<1x64xf32>
    %c5 = arith.constant 5 : index
    %c0_5 = arith.constant 0 : index
    %5 = vector.load %arg4[%c5, %c0_5] : memref<8x128xf32, #tpu.memory_space<vmem>>, vector<1x64xf32>
    %c6 = arith.constant 6 : index
    %c0_6 = arith.constant 0 : index
    %6 = vector.load %arg4[%c6, %c0_6] : memref<8x128xf32, #tpu.memory_space<vmem>>, vector<1x128xf32>
    %c0_7 = arith.constant 0 : index
    %c0_8 = arith.constant 0 : index
    %7 = vector.load %arg0[%c0_7, %c0_8] : memref<128x37xf32, #tpu.memory_space<vmem>>, vector<128x37xf32>
    %c0_9 = arith.constant 0 : index
    %c0_10 = arith.constant 0 : index
    %8 = vector.load %arg1[%c0_9, %c0_10] : memref<37x64xf32, #tpu.memory_space<vmem>>, vector<37x64xf32>
    %cst = arith.constant dense<0.000000e+00> : vector<128x64xf32>
    %9 = tpu.matmul %7, %8, %cst {dimension_numbers = #tpu.dot_dimension_numbers<[1], [0], [0], [1], [0, 0, 1, 1], [], []>} : vector<128x37xf32>, vector<37x64xf32>, vector<128x64xf32> -> vector<128x64xf32>
    %10 = vector.broadcast %0 : vector<1x64xf32> to vector<128x64xf32>
    %11 = arith.addf %9, %10 : vector<128x64xf32>
    %cst_11 = arith.constant 0.000000e+00 : f32
    %12 = vector.broadcast %cst_11 : f32 to vector<128x64xf32>
    %13 = arith.maximumf %11, %12 : vector<128x64xf32>
    %cst_12 = arith.constant dense<0.000000e+00> : vector<64xf32>
    %14 = vector.multi_reduction <add>, %13, %cst_12 [0] : vector<128x64xf32> to vector<64xf32>
    %15 = vector.shape_cast %14 : vector<64xf32> to vector<1x64xf32>
    %cst_13 = arith.constant 1.280000e+02 : f32
    %16 = vector.broadcast %cst_13 : f32 to vector<1x64xf32>
    %17 = arith.divf %15, %16 : vector<1x64xf32>
    %18 = vector.broadcast %17 : vector<1x64xf32> to vector<128x64xf32>
    %19 = arith.subf %13, %18 : vector<128x64xf32>
    %20 = arith.mulf %19, %19 : vector<128x64xf32>
    %cst_14 = arith.constant dense<0.000000e+00> : vector<64xf32>
    %21 = vector.multi_reduction <add>, %20, %cst_14 [0] : vector<128x64xf32> to vector<64xf32>
    %22 = vector.shape_cast %21 : vector<64xf32> to vector<1x64xf32>
    %cst_15 = arith.constant 1.280000e+02 : f32
    %23 = vector.broadcast %cst_15 : f32 to vector<1x64xf32>
    %24 = arith.divf %22, %23 : vector<1x64xf32>
    %cst_16 = arith.constant 9.99999974E-6 : f32
    %25 = vector.broadcast %cst_16 : f32 to vector<1x64xf32>
    %26 = arith.addf %24, %25 : vector<1x64xf32>
    %27 = math.rsqrt %26 : vector<1x64xf32>
    %28 = vector.broadcast %27 : vector<1x64xf32> to vector<128x64xf32>
    %29 = arith.mulf %19, %28 : vector<128x64xf32>
    %30 = vector.broadcast %1 : vector<1x64xf32> to vector<128x64xf32>
    %31 = arith.mulf %29, %30 : vector<128x64xf32>
    %32 = vector.broadcast %2 : vector<1x64xf32> to vector<128x64xf32>
    %33 = arith.addf %31, %32 : vector<128x64xf32>
    %c0_17 = arith.constant 0 : index
    %c0_18 = arith.constant 0 : index
    %34 = vector.load %arg2[%c0_17, %c0_18] : memref<64x64xf32, #tpu.memory_space<vmem>>, vector<64x64xf32>
    %cst_19 = arith.constant dense<0.000000e+00> : vector<128x64xf32>
    %35 = tpu.matmul %33, %34, %cst_19 {dimension_numbers = #tpu.dot_dimension_numbers<[1], [0], [0], [1], [0, 0, 1, 1], [], []>} : vector<128x64xf32>, vector<64x64xf32>, vector<128x64xf32> -> vector<128x64xf32>
    %36 = vector.broadcast %3 : vector<1x64xf32> to vector<128x64xf32>
    %37 = arith.addf %35, %36 : vector<128x64xf32>
    %cst_20 = arith.constant 0.000000e+00 : f32
    %38 = vector.broadcast %cst_20 : f32 to vector<128x64xf32>
    %39 = arith.maximumf %37, %38 : vector<128x64xf32>
    %cst_21 = arith.constant dense<0.000000e+00> : vector<64xf32>
    %40 = vector.multi_reduction <add>, %39, %cst_21 [0] : vector<128x64xf32> to vector<64xf32>
    %41 = vector.shape_cast %40 : vector<64xf32> to vector<1x64xf32>
    %cst_22 = arith.constant 1.280000e+02 : f32
    %42 = vector.broadcast %cst_22 : f32 to vector<1x64xf32>
    %43 = arith.divf %41, %42 : vector<1x64xf32>
    %44 = vector.broadcast %43 : vector<1x64xf32> to vector<128x64xf32>
    %45 = arith.subf %39, %44 : vector<128x64xf32>
    %46 = arith.mulf %45, %45 : vector<128x64xf32>
    %cst_23 = arith.constant dense<0.000000e+00> : vector<64xf32>
    %47 = vector.multi_reduction <add>, %46, %cst_23 [0] : vector<128x64xf32> to vector<64xf32>
    %48 = vector.shape_cast %47 : vector<64xf32> to vector<1x64xf32>
    %cst_24 = arith.constant 1.280000e+02 : f32
    %49 = vector.broadcast %cst_24 : f32 to vector<1x64xf32>
    %50 = arith.divf %48, %49 : vector<1x64xf32>
    %cst_25 = arith.constant 9.99999974E-6 : f32
    %51 = vector.broadcast %cst_25 : f32 to vector<1x64xf32>
    %52 = arith.addf %50, %51 : vector<1x64xf32>
    %53 = math.rsqrt %52 : vector<1x64xf32>
    %54 = vector.broadcast %53 : vector<1x64xf32> to vector<128x64xf32>
    %55 = arith.mulf %45, %54 : vector<128x64xf32>
    %56 = vector.broadcast %4 : vector<1x64xf32> to vector<128x64xf32>
    %57 = arith.mulf %55, %56 : vector<128x64xf32>
    %58 = vector.broadcast %5 : vector<1x64xf32> to vector<128x64xf32>
    %59 = arith.addf %57, %58 : vector<128x64xf32>
    %c0_26 = arith.constant 0 : index
    %c0_27 = arith.constant 0 : index
    %60 = vector.load %arg3[%c0_26, %c0_27] : memref<64x128xf32, #tpu.memory_space<vmem>>, vector<64x128xf32>
    %cst_28 = arith.constant dense<0.000000e+00> : vector<128x128xf32>
    %61 = tpu.matmul %59, %60, %cst_28 {dimension_numbers = #tpu.dot_dimension_numbers<[1], [0], [0], [1], [0, 0, 1, 1], [], []>} : vector<128x64xf32>, vector<64x128xf32>, vector<128x128xf32> -> vector<128x128xf32>
    %62 = vector.broadcast %6 : vector<1x128xf32> to vector<128x128xf32>
    %63 = arith.addf %61, %62 : vector<128x128xf32>
    %64 = math.tanh %63 : vector<128x128xf32>
    %65 = tpu.iota {dimensions = array<i32: 1>} : vector<1x128xi32>
    %c4_i32 = arith.constant 4 : i32
    %66 = vector.broadcast %c4_i32 : i32 to vector<1x128xi32>
    %67 = arith.cmpi eq, %65, %66 : vector<1x128xi32>
    %cst_29 = arith.constant 0.000000e+00 : f32
    %68 = vector.shape_cast %67 : vector<1x128xi1> to vector<1x128xi1>
    %69 = vector.broadcast %68 : vector<1x128xi1> to vector<128x128xi1>
    %70 = vector.broadcast %cst_29 : f32 to vector<128x128xf32>
    %71 = arith.select %69, %64, %70 : vector<128x128xi1>, vector<128x128xf32>
    %cst_30 = arith.constant dense<0.000000e+00> : vector<128xf32>
    %72 = vector.multi_reduction <add>, %71, %cst_30 [1] : vector<128x128xf32> to vector<128xf32>
    %73 = vector.shape_cast %72 : vector<128xf32> to vector<128x1xf32>
    %cst_31 = arith.constant dense<0.000000e+00> : vector<128xf32>
    %74 = vector.multi_reduction <add>, %64, %cst_31 [1] : vector<128x128xf32> to vector<128xf32>
    %75 = vector.shape_cast %74 : vector<128xf32> to vector<128x1xf32>
    %76 = arith.subf %75, %73 : vector<128x1xf32>
    %cst_32 = arith.constant 2.500000e-01 : f32
    %77 = vector.broadcast %cst_32 : f32 to vector<128x1xf32>
    %78 = arith.mulf %76, %77 : vector<128x1xf32>
    %79 = arith.subf %73, %78 : vector<128x1xf32>
    %80 = vector.broadcast %79 : vector<128x1xf32> to vector<128x128xf32>
    %81 = arith.addf %80, %64 : vector<128x128xf32>
    %c0_33 = arith.constant 0 : index
    %c0_34 = arith.constant 0 : index
    %82 = vector.load %arg5[%c0_33, %c0_34] : memref<128x128xf32, #tpu.memory_space<vmem>>, vector<128x128xf32>
    tpu.vector_store %arg5[%c0_33, %c0_34], %81 {strides = array<i32>} : memref<128x128xf32, #tpu.memory_space<vmem>>, vector<128x128xf32>,
    return
  }
}

</mosaic_0001>

<llo_original>
// kernel: tpu_custom_call.1
$region0: #{tpu_custom_call.1}
  #allocation0 [shape = 'u32[]', space=smem, size = 0x4, offset = 0x4, fixed_abs, tag = 'smem constant byte address 0x4 - core index']
  #allocation1 [shape = 'u32[144,128]{1,0:T(1,128)}', space=vmem, size = 0x12000, scoped, tag = 'internal scratch']
  %s0 = inlined_call_operand.vmem [shape: f32[128,37], index: 0, kind: input, shape index: {}]
  %s1 = inlined_call_operand.vmem [shape: f32[37,64], index: 1, kind: input, shape index: {}]
  %s2 = inlined_call_operand.vmem [shape: f32[64,64], index: 2, kind: input, shape index: {}]
  %s3 = inlined_call_operand.vmem [shape: f32[64,128], index: 3, kind: input, shape index: {}]
  %s4 = inlined_call_operand.vmem [shape: f32[8,128], index: 4, kind: input, shape index: {}]
  %s5 = inlined_call_operand.hbm [shape: f32[128,128], index: 5, kind: output, shape index: {}]
  %s6 = sld [smem:[#allocation0]]
  $region30: #{tpu_custom_call.1} parent=0
    _
  %s8 = ssub.s32 1, %s6
  %s9 = scalar_select 0, %s8, %s6
  $region1: #{tpu_custom_call.1} parent=0
    #allocation2 [shape = 'u8[65536]{0}', space=vmem, size = 0x10000, scoped, tag = 'output window, operand 0, single buffered']
    #allocation3 [shape = 's32[1]{0}', space=sflag, size = 0x4, scoped, tag = 'scoped memory for tpu_custom_call.1']
    %10 = vsyncpa [#allocation3], 0
    // Predicated region
    $region2: #{tpu_custom_call.1} parent=1 // pred_check
      _
    $region3: #{tpu_custom_call.1} parent=1 // pred_check_branch
      %12 = sbr.rel (0) target = $region5
    $region4: #{tpu_custom_call.1} parent=1 // pred_region
      _
    $region5: #{tpu_custom_call.1} parent=1 // pred_fallthru
      _
    // Predicated region
    $region6: #{tpu_custom_call.1} parent=1 // pred_check
      _
    $region7: #{tpu_custom_call.1} parent=1 // pred_check_branch
      %14 = sbr.rel (0) target = $region9
    $region8: #{tpu_custom_call.1} parent=1 // pred_region
      _
    $region9: #{tpu_custom_call.1} parent=1 // pred_fallthru
      _
    // Predicated region
    $region10: #{tpu_custom_call.1} parent=1 // pred_check
      _
    $region11: #{tpu_custom_call.1} parent=1 // pred_check_branch
      %16 = sbr.rel (0) target = $region13
    $region12: #{tpu_custom_call.1} parent=1 // pred_region
      _
    $region13: #{tpu_custom_call.1} parent=1 // pred_fallthru
      _
    // Predicated region
    $region14: #{tpu_custom_call.1} parent=1 // pred_check
      _
    $region15: #{tpu_custom_call.1} parent=1 // pred_check_branch
      %18 = sbr.rel (0) target = $region17
    $region16: #{tpu_custom_call.1} parent=1 // pred_region
      _
    $region17: #{tpu_custom_call.1} parent=1 // pred_fallthru
      _
    // Predicated region
    $region18: #{tpu_custom_call.1} parent=1 // pred_check
      _
    $region19: #{tpu_custom_call.1} parent=1 // pred_check_branch
      %20 = sbr.rel (0) target = $region21
    $region20: #{tpu_custom_call.1} parent=1 // pred_region
      _
    $region21: #{tpu_custom_call.1} parent=1 // pred_fallthru
      _
    %v21 = vld [vmem:[%s4] sm:$0x1]
    %v22 = vld [vmem:[%s4 + $0x1] sm:$0x1]
    %v23 = vld [vmem:[%s4 + $0x2] sm:$0x1]
    %v24 = vld [vmem:[%s4 + $0x3] sm:$0x1]
    %v25 = vld [vmem:[%s4 + $0x4] sm:$0x1]
    %v26 = vld [vmem:[%s4 + $0x5] sm:$0x1]
    %v27 = vld [vmem:[%s4 + $0x6] sm:$0x1]
    %v28 = vld [vmem:[%s0] sm:$0xff]
    %v29 = vld [vmem:[%s0 + $0x8] sm:$0xff]
    %v30 = vld [vmem:[%s0 + $0x10] sm:$0xff]
    %v31 = vld [vmem:[%s0 + $0x18] sm:$0xff]
    %v32 = vld [vmem:[%s0 + $0x20] sm:$0xff]
    %v33 = vld [vmem:[%s0 + $0x28] sm:$0xff]
    %v34 = vld [vmem:[%s0 + $0x30] sm:$0xff]
    %v35 = vld [vmem:[%s0 + $0x38] sm:$0xff]
    %v36 = vld [vmem:[%s0 + $0x40] sm:$0xff]
    %v37 = vld [vmem:[%s0 + $0x48] sm:$0xff]
    %v38 = vld [vmem:[%s0 + $0x50] sm:$0xff]
    %v39 = vld [vmem:[%s0 + $0x58] sm:$0xff]
    %v40 = vld [vmem:[%s0 + $0x60] sm:$0xff]
    %v41 = vld [vmem:[%s0 + $0x68] sm:$0xff]
    %v42 = vld [vmem:[%s0 + $0x70] sm:$0xff]
    %v43 = vld [vmem:[%s0 + $0x78] sm:$0xff]
    %v44 = vld [vmem:[%s1] sm:$0xff]
    %v45 = vld [vmem:[%s1 + $0x8] sm:$0xff]
    %v46 = vld [vmem:[%s1 + $0x10] sm:$0xff]
    %v47 = vld [vmem:[%s1 + $0x18] sm:$0xff]
    %v48 = vld [vmem:[%s1 + $0x20] sm:$0x1f]
    %v49 = vlaneseq
    %v50 = vshrl.u32 %v49, 7
    %v51 = vsub.s32 0, %v50
    %v52 = vrot.slane %v21, %v51
    %vm53 = vcmask 302080
    %v55 = vsel %vm53, %v28, 0
    %v58 = vsel %vm53, %v29, 0
    %v61 = vsel %vm53, %v30, 0
    %v64 = vsel %vm53, %v31, 0
    %v67 = vsel %vm53, %v32, 0
    %v70 = vsel %vm53, %v33, 0
    %v73 = vsel %vm53, %v34, 0
    %v76 = vsel %vm53, %v35, 0
    %v79 = vsel %vm53, %v36, 0
    %v82 = vsel %vm53, %v37, 0
    %v85 = vsel %vm53, %v38, 0
    %v88 = vsel %vm53, %v39, 0
    %v91 = vsel %vm53, %v40, 0
    %v94 = vsel %vm53, %v41, 0
    %v97 = vsel %vm53, %v42, 0
    %v100 = vsel %vm53, %v43, 0
    %vm102 = vcmask 1044480
    %v104 = vsel %vm102, %v48, 0
    %106 = vmatprep.subr.mxu0 0.0
    %107 = vmatpush1.msra.mxu0 %v44
    %108 = vmatprep.subr.mxu0 0.0
    %109 = vmatpush1.msra.mxu0 %v45
    %110 = vmatprep.subr.mxu0 0.0
    %111 = vmatpush1.msra.mxu0 %v46
    %112 = vmatprep.subr.mxu0 0.0
    %113 = vmatpush1.msra.mxu0 %v47
    %114 = vmatprep.subr.mxu0 0.0
    %115 = vmatpush1.msra.mxu0 %v104
    %116 = vmatprep.subr.mxu0 0.0
    %117 = vmatpush1.msra.mxu0 0.0
    %118 = vmatprep.subr.mxu0 0.0
    %119 = vmatpush1.msra.mxu0 0.0
    %120 = vmatprep.subr.mxu0 0.0
    %121 = vmatpush1.msra.mxu0 0.0
    %122 = vmatprep.subr.mxu0 0.0
    %123 = vmatpush1.msra.mxu0 0.0
    %124 = vmatprep.subr.mxu0 0.0
    %125 = vmatpush1.msra.mxu0 0.0
    %126 = vmatprep.subr.mxu0 0.0
    %127 = vmatpush1.msra.mxu0 0.0
    %128 = vmatprep.subr.mxu0 0.0
    %129 = vmatpush1.msra.mxu0 0.0
    %130 = vmatprep.subr.mxu0 0.0
    %131 = vmatpush1.msra.mxu0 0.0
    %132 = vmatprep.subr.mxu0 0.0
    %133 = vmatpush1.msra.mxu0 0.0
    %134 = vmatprep.subr.mxu0 0.0
    %135 = vmatpush1.msra.mxu0 0.0
    %136 = vmatprep.subr.mxu0 0.0
    %137 = vmatpush1.msra.mxu0 0.0
    %138 = vmatprep.subr.mxu0 0.0
    %139 = vmatpush1.msra.mxu0 0.0
    %140 = vmatprep.subr.mxu0 0.0
    %141 = vmatpush1.msra.mxu0 0.0
    %142 = vmatprep.subr.mxu0 0.0
    %143 = vmatpush1.msra.mxu0 0.0
    %144 = vmatprep.subr.mxu0 0.0
    %145 = vmatpush1.msra.mxu0 0.0
    %146 = vmatprep.subr.mxu0 0.0
    %147 = vmatpush1.msra.mxu0 0.0
    %148 = vmatprep.subr.mxu0 0.0
    %149 = vmatpush1.msra.mxu0 0.0
    %150 = vmatprep.subr.mxu0 0.0
    %151 = vmatpush1.msra.mxu0 0.0
    %152 = vmatprep.subr.mxu0 0.0
    %153 = vmatpush1.msra.mxu0 0.0
    %154 = vmatprep.subr.mxu0 0.0
    %155 = vmatpush1.msra.mxu0 0.0
    %156 = vmatprep.subr.mxu0 0.0
    %157 = vmatpush1.msra.mxu0 0.0
    %158 = vmatprep.subr.mxu0 0.0
    %159 = vmatpush1.msra.mxu0 0.0
    %160 = vmatprep.subr.mxu0 0.0
    %161 = vmatpush1.msra.mxu0 0.0
    %162 = vmatprep.subr.mxu0 0.0
    %163 = vmatpush1.msra.mxu0 0.0
    %164 = vmatprep.subr.mxu0 0.0
    %165 = vmatpush1.msra.mxu0 0.0
    %166 = vmatprep.subr.mxu0 0.0
    %167 = vmatpush1.msra.mxu0 0.0
    %168 = vmatprep.subr.mxu0 0.0
    %169 = vmatpush1.msra.mxu0 0.0
    %170 = vmatprep.mubr.f32.mxu0 0.0
    %171 = vmatmul.mubr.f32.gmra.mrb[0].mxu0 %v55
    %v172 = vpop.f32.mrb[0].mxu0
    %v173 = vadd.f32 %v52, %v172
    %v174 = vpop.f32.mrb[0].mxu0
    %175 = vmatprep.mubr.f32.mxu0 0.0
    %176 = vmatmul.mubr.f32.gmra.mrb[0].mxu0 %v58
    %v177 = vpop.f32.mrb[0].mxu0
    %v178 = vadd.f32 %v52, %v177
    %v179 = vpop.f32.mrb[0].mxu0
    %180 = vmatprep.mubr.f32.mxu0 0.0
    %181 = vmatmul.mubr.f32.gmra.mrb[0].mxu0 %v61
    %v182 = vpop.f32.mrb[0].mxu0
    %v183 = vadd.f32 %v52, %v182
    %v184 = vpop.f32.mrb[0].mxu0
    %185 = vmatprep.mubr.f32.mxu0 0.0
    %186 = vmatmul.mubr.f32.gmra.mrb[0].mxu0 %v64
    %v187 = vpop.f32.mrb[0].mxu0
    %v188 = vadd.f32 %v52, %v187
    %v189 = vpop.f32.mrb[0].mxu0
    %190 = vmatprep.mubr.f32.mxu0 0.0
    %191 = vmatmul.mubr.f32.gmra.mrb[0].mxu0 %v67
    %v192 = vpop.f32.mrb[0].mxu0
    %v193 = vadd.f32 %v52, %v192
    %v194 = vpop.f32.mrb[0].mxu0
    %195 = vmatprep.mubr.f32.mxu0 0.0
    %196 = vmatmul.mubr.f32.gmra.mrb[0].mxu0 %v70
    %v197 = vpop.f32.mrb[0].mxu0
    %v198 = vadd.f32 %v52, %v197
    %v199 = vpop.f32.mrb[0].mxu0
    %200 = vmatprep.mubr.f32.mxu0 0.0
    %201 = vmatmul.mubr.f32.gmra.mrb[0].mxu0 %v73
    %v202 = vpop.f32.mrb[0].mxu0
    %v203 = vadd.f32 %v52, %v202
    %v204 = vpop.f32.mrb[0].mxu0
    %205 = vmatprep.mubr.f32.mxu0 0.0
    %206 = vmatmul.mubr.f32.gmra.mrb[0].mxu0 %v76
    %v207 = vpop.f32.mrb[0].mxu0
    %v208 = vadd.f32 %v52, %v207
    %v209 = vpop.f32.mrb[0].mxu0
    %210 = vmatprep.mubr.f32.mxu0 0.0
    %211 = vmatmul.mubr.f32.gmra.mrb[0].mxu0 %v79
    %v212 = vpop.f32.mrb[0].mxu0
    %v213 = vadd.f32 %v52, %v212
    %v214 = vpop.f32.mrb[0].mxu0
    %215 = vmatprep.mubr.f32.mxu0 0.0
    %216 = vmatmul.mubr.f32.gmra.mrb[0].mxu0 %v82
    %v217 = vpop.f32.mrb[0].mxu0
    %v218 = vadd.f32 %v52, %v217
    %v219 = vpop.f32.mrb[0].mxu0
    %220 = vmatprep.mubr.f32.mxu0 0.0
    %221 = vmatmul.mubr.f32.gmra.mrb[0].mxu0 %v85
    %v222 = vpop.f32.mrb[0].mxu0
    %v223 = vadd.f32 %v52, %v222
    %v224 = vpop.f32.mrb[0].mxu0
    %225 = vmatprep.mubr.f32.mxu0 0.0
    %226 = vmatmul.mubr.f32.gmra.mrb[0].mxu0 %v88
    %v227 = vpop.f32.mrb[0].mxu0
    %v228 = vadd.f32 %v52, %v227
    %v229 = vpop.f32.mrb[0].mxu0
    %230 = vmatprep.mubr.f32.mxu0 0.0
    %231 = vmatmul.mubr.f32.gmra.mrb[0].mxu0 %v91
    %v232 = vpop.f32.mrb[0].mxu0
    %v233 = vadd.f32 %v52, %v232
    %v234 = vpop.f32.mrb[0].mxu0
    %235 = vmatprep.mubr.f32.mxu0 0.0
    %236 = vmatmul.mubr.f32.gmra.mrb[0].mxu0 %v94
    %v237 = vpop.f32.mrb[0].mxu0
    %v238 = vadd.f32 %v52, %v237
    %v239 = vpop.f32.mrb[0].mxu0
    %240 = vmatprep.mubr.f32.mxu0 0.0
    %241 = vmatmul.mubr.f32.gmra.mrb[0].mxu0 %v97
    %v242 = vpop.f32.mrb[0].mxu0
    %v243 = vadd.f32 %v52, %v242
    %v244 = vpop.f32.mrb[0].mxu0
    %245 = vmatprep.mubr.f32.mxu0 0.0
    %246 = vmatmul.mubr.f32.gmra.mrb[0].mxu0 %v100
    %v247 = vpop.f32.mrb[0].mxu0
    %v248 = vadd.f32 %v52, %v247
    %v249 = vpop.f32.mrb[0].mxu0
    %250 = vdwg.mxu0
    %v251 = vmax.f32 %v173, 0.0
    %v252 = vmax.f32 %v178, 0.0
    %v253 = vmax.f32 %v183, 0.0
    %v254 = vmax.f32 %v188, 0.0
    %v255 = vmax.f32 %v193, 0.0
    %v256 = vmax.f32 %v198, 0.0
    %v257 = vmax.f32 %v203, 0.0
    %v258 = vmax.f32 %v208, 0.0
    %v259 = vmax.f32 %v213, 0.0
    %v260 = vmax.f32 %v218, 0.0
    %v261 = vmax.f32 %v223, 0.0
    %v262 = vmax.f32 %v228, 0.0
    %v263 = vmax.f32 %v233, 0.0
    %v264 = vmax.f32 %v238, 0.0
    %v265 = vmax.f32 %v243, 0.0
    %v266 = vmax.f32 %v248, 0.0
    %vm267 = vcmask 523264
    %v268 = vsel %vm267, %v251, 0.0
    %v269 = vsel %vm267, %v252, 0.0
    %v270 = vadd.f32 %v268, %v269
    %v271 = vsel %vm267, %v253, 0.0
    %v272 = vadd.f32 %v270, %v271
    %v273 = vsel %vm267, %v254, 0.0
    %v274 = vadd.f32 %v272, %v273
    %v275 = vsel %vm267, %v255, 0.0
    %v276 = vadd.f32 %v274, %v275
    %v277 = vsel %vm267, %v256, 0.0
    %v278 = vadd.f32 %v276, %v277
    %v279 = vsel %vm267, %v257, 0.0
    %v280 = vadd.f32 %v278, %v279
    %v281 = vsel %vm267, %v258, 0.0
    %v282 = vadd.f32 %v280, %v281
    %v283 = vsel %vm267, %v259, 0.0
    %v284 = vadd.f32 %v282, %v283
    %v285 = vsel %vm267, %v260, 0.0
    %v286 = vadd.f32 %v284, %v285
    %v287 = vsel %vm267, %v261, 0.0
    %v288 = vadd.f32 %v286, %v287
    %v289 = vsel %vm267, %v262, 0.0
    %v290 = vadd.f32 %v288, %v289
    %v291 = vsel %vm267, %v263, 0.0
    %v292 = vadd.f32 %v290, %v291
    %v293 = vsel %vm267, %v264, 0.0
    %v294 = vadd.f32 %v292, %v293
    %v295 = vsel %vm267, %v265, 0.0
    %v296 = vadd.f32 %v294, %v295
    %v297 = vsel %vm267, %v266, 0.0
    %v298 = vadd.f32 %v296, %v297
    %v299 = vrot.slane %v298, 4
    %v300 = vadd.f32 %v298, %v299
    %v301 = vrot.slane %v300, 2
    %v302 = vadd.f32 %v300, %v301
    %v303 = vrot.slane %v302, 1
    %v304 = vadd.f32 %v302, %v303
    %v305 = vrcp.pop 128.0
    %v306 = vmul.f32 %v304, %v305
    %v307 = vsub.f32 %v251, %v306
    %v308 = vsub.f32 %v252, %v306
    %v309 = vsub.f32 %v253, %v306
    %v310 = vsub.f32 %v254, %v306
    %v311 = vsub.f32 %v255, %v306
    %v312 = vsub.f32 %v256, %v306
    %v313 = vsub.f32 %v257, %v306
    %v314 = vsub.f32 %v258, %v306
    %v315 = vsub.f32 %v259, %v306
    %v316 = vsub.f32 %v260, %v306
    %v317 = vsub.f32 %v261, %v306
    %v318 = vsub.f32 %v262, %v306
    %v319 = vsub.f32 %v263, %v306
    %v320 = vsub.f32 %v264, %v306
    %v321 = vsub.f32 %v265, %v306
    %v322 = vsub.f32 %v266, %v306
    %v323 = vmul.f32 %v307, %v307
    %v324 = vmul.f32 %v308, %v308
    %v325 = vmul.f32 %v309, %v309
    %v326 = vmul.f32 %v310, %v310
    %v327 = vmul.f32 %v311, %v311
    %v328 = vmul.f32 %v312, %v312
    %v329 = vmul.f32 %v313, %v313
    %v330 = vmul.f32 %v314, %v314
    %v331 = vmul.f32 %v315, %v315
    %v332 = vmul.f32 %v316, %v316
    %v333 = vmul.f32 %v317, %v317
    %v334 = vmul.f32 %v318, %v318
    %v335 = vmul.f32 %v319, %v319
    %v336 = vmul.f32 %v320, %v320
    %v337 = vmul.f32 %v321, %v321
    %v338 = vmul.f32 %v322, %v322
    %v339 = vsel %vm267, %v323, 0.0
    %v340 = vsel %vm267, %v324, 0.0
    %v341 = vadd.f32 %v339, %v340
    %v342 = vsel %vm267, %v325, 0.0
    %v343 = vadd.f32 %v341, %v342
    %v344 = vsel %vm267, %v326, 0.0
    %v345 = vadd.f32 %v343, %v344
    %v346 = vsel %vm267, %v327, 0.0
    %v347 = vadd.f32 %v345, %v346
    %v348 = vsel %vm267, %v328, 0.0
    %v349 = vadd.f32 %v347, %v348
    %v350 = vsel %vm267, %v329, 0.0
    %v351 = vadd.f32 %v349, %v350
    %v352 = vsel %vm267, %v330, 0.0
    %v353 = vadd.f32 %v351, %v352
    %v354 = vsel %vm267, %v331, 0.0
    %v355 = vadd.f32 %v353, %v354
    %v356 = vsel %vm267, %v332, 0.0
    %v357 = vadd.f32 %v355, %v356
    %v358 = vsel %vm267, %v333, 0.0
    %v359 = vadd.f32 %v357, %v358
    %v360 = vsel %vm267, %v334, 0.0
    %v361 = vadd.f32 %v359, %v360
    %v362 = vsel %vm267, %v335, 0.0
    %v363 = vadd.f32 %v361, %v362
    %v364 = vsel %vm267, %v336, 0.0
    %v365 = vadd.f32 %v363, %v364
    %v366 = vsel %vm267, %v337, 0.0
    %v367 = vadd.f32 %v365, %v366
    %v368 = vsel %vm267, %v338, 0.0
    %v369 = vadd.f32 %v367, %v368
    %v370 = vrot.slane %v369, 4
    %v371 = vadd.f32 %v369, %v370
    %v372 = vrot.slane %v371, 2
    %v373 = vadd.f32 %v371, %v372
    %v374 = vrot.slane %v373, 1
    %v375 = vadd.f32 %v373, %v374
    %v376 = vmul.f32 %v375, %v305
    %v377 = vadd.f32 %v376, 1e-05
    %v378 = vrsqrt.pop %v377
    %v379 = vmul.f32 %v307, %v378
    %v380 = vmul.f32 %v308, %v378
    %v381 = vmul.f32 %v309, %v378
    %v382 = vmul.f32 %v310, %v378
    %v383 = vmul.f32 %v311, %v378
    %v384 = vmul.f32 %v312, %v378
    %v385 = vmul.f32 %v313, %v378
    %v386 = vmul.f32 %v314, %v378
    %v387 = vmul.f32 %v315, %v378
    %v388 = vmul.f32 %v316, %v378
    %v389 = vmul.f32 %v317, %v378
    %v390 = vmul.f32 %v318, %v378
    %v391 = vmul.f32 %v319, %v378
    %v392 = vmul.f32 %v320, %v378
    %v393 = vmul.f32 %v321, %v378
    %v394 = vmul.f32 %v322, %v378
    %v395 = vlaneseq
    %v396 = vshrl.u32 %v395, 7
    %v397 = vsub.s32 0, %v396
    %v398 = vrot.slane %v22, %v397
    %v399 = vmul.f32 %v379, %v398
    %v400 = vmul.f32 %v380, %v398
    %v401 = vmul.f32 %v381, %v398
    %v402 = vmul.f32 %v382, %v398
    %v403 = vmul.f32 %v383, %v398
    %v404 = vmul.f32 %v384, %v398
    %v405 = vmul.f32 %v385, %v398
    %v406 = vmul.f32 %v386, %v398
    %v407 = vmul.f32 %v387, %v398
    %v408 = vmul.f32 %v388, %v398
    %v409 = vmul.f32 %v389, %v398
    %v410 = vmul.f32 %v390, %v398
    %v411 = vmul.f32 %v391, %v398
    %v412 = vmul.f32 %v392, %v398
    %v413 = vmul.f32 %v393, %v398
    %v414 = vmul.f32 %v394, %v398
    %v415 = vlaneseq
    %v416 = vshrl.u32 %v415, 7
    %v417 = vsub.s32 0, %v416
    %v418 = vrot.slane %v23, %v417
    %v419 = vadd.f32 %v399, %v418
    %v420 = vadd.f32 %v400, %v418
    %v421 = vadd.f32 %v401, %v418
    %v422 = vadd.f32 %v402, %v418
    %v423 = vadd.f32 %v403, %v418
    %v424 = vadd.f32 %v404, %v418
    %v425 = vadd.f32 %v405, %v418
    %v426 = vadd.f32 %v406, %v418
    %v427 = vadd.f32 %v407, %v418
    %v428 = vadd.f32 %v408, %v418
    %v429 = vadd.f32 %v409, %v418
    %v430 = vadd.f32 %v410, %v418
    %v431 = vadd.f32 %v411, %v418
    %v432 = vadd.f32 %v412, %v418
    %v433 = vadd.f32 %v413, %v418
    %v434 = vadd.f32 %v414, %v418
    %v435 = vld [vmem:[%s2] sm:$0xff]
    %v436 = vld [vmem:[%s2 + $0x8] sm:$0xff]
    %v437 = vld [vmem:[%s2 + $0x10] sm:$0xff]
    %v438 = vld [vmem:[%s2 + $0x18] sm:$0xff]
    %v439 = vld [vmem:[%s2 + $0x20] sm:$0xff]
    %v440 = vld [vmem:[%s2 + $0x28] sm:$0xff]
    %v441 = vld [vmem:[%s2 + $0x30] sm:$0xff]
    %v442 = vld [vmem:[%s2 + $0x38] sm:$0xff]
    %v443 = vlaneseq
    %v444 = vshrl.u32 %v443, 7
    %v445 = vsub.s32 0, %v444
    %v446 = vrot.slane %v24, %v445
    %v448 = vsel %vm267, %v419, 0
    %v451 = vsel %vm267, %v420, 0
    %v454 = vsel %vm267, %v421, 0
    %v457 = vsel %vm267, %v422, 0
    %v460 = vsel %vm267, %v423, 0
    %v463 = vsel %vm267, %v424, 0
    %v466 = vsel %vm267, %v425, 0
    %v469 = vsel %vm267, %v426, 0
    %v472 = vsel %vm267, %v427, 0
    %v475 = vsel %vm267, %v428, 0
    %v478 = vsel %vm267, %v429, 0
    %v481 = vsel %vm267, %v430, 0
    %v484 = vsel %vm267, %v431, 0
    %v487 = vsel %vm267, %v432, 0
    %v490 = vsel %vm267, %v433, 0
    %v493 = vsel %vm267, %v434, 0
    %495 = vmatprep.subr.mxu0 0.0
    %496 = vmatpush1.msra.mxu0 %v435
    %497 = vmatprep.subr.mxu0 0.0
    %498 = vmatpush1.msra.mxu0 %v436
    %499 = vmatprep.subr.mxu0 0.0
    %500 = vmatpush1.msra.mxu0 %v437
    %501 = vmatprep.subr.mxu0 0.0
    %502 = vmatpush1.msra.mxu0 %v438
    %503 = vmatprep.subr.mxu0 0.0
    %504 = vmatpush1.msra.mxu0 %v439
    %505 = vmatprep.subr.mxu0 0.0
    %506 = vmatpush1.msra.mxu0 %v440
    %507 = vmatprep.subr.mxu0 0.0
    %508 = vmatpush1.msra.mxu0 %v441
    %509 = vmatprep.subr.mxu0 0.0
    %510 = vmatpush1.msra.mxu0 %v442
    %511 = vmatprep.subr.mxu0 0.0
    %512 = vmatpush1.msra.mxu0 0.0
    %513 = vmatprep.subr.mxu0 0.0
    %514 = vmatpush1.msra.mxu0 0.0
    %515 = vmatprep.subr.mxu0 0.0
    %516 = vmatpush1.msra.mxu0 0.0
    %517 = vmatprep.subr.mxu0 0.0
    %518 = vmatpush1.msra.mxu0 0.0
    %519 = vmatprep.subr.mxu0 0.0
    %520 = vmatpush1.msra.mxu0 0.0
    %521 = vmatprep.subr.mxu0 0.0
    %522 = vmatpush1.msra.mxu0 0.0
    %523 = vmatprep.subr.mxu0 0.0
    %524 = vmatpush1.msra.mxu0 0.0
    %525 = vmatprep.subr.mxu0 0.0
    %526 = vmatpush1.msra.mxu0 0.0
    %527 = vmatprep.subr.mxu0 0.0
    %528 = vmatpush1.msra.mxu0 0.0
    %529 = vmatprep.subr.mxu0 0.0
    %530 = vmatpush1.msra.mxu0 0.0
    %531 = vmatprep.subr.mxu0 0.0
    %532 = vmatpush1.msra.mxu0 0.0
    %533 = vmatprep.subr.mxu0 0.0
    %534 = vmatpush1.msra.mxu0 0.0
    %535 = vmatprep.subr.mxu0 0.0
    %536 = vmatpush1.msra.mxu0 0.0
    %537 = vmatprep.subr.mxu0 0.0
    %538 = vmatpush1.msra.mxu0 0.0
    %539 = vmatprep.subr.mxu0 0.0
    %540 = vmatpush1.msra.mxu0 0.0
    %541 = vmatprep.subr.mxu0 0.0
    %542 = vmatpush1.msra.mxu0 0.0
    %543 = vmatprep.subr.mxu0 0.0
    %544 = vmatpush1.msra.mxu0 0.0
    %545 = vmatprep.subr.mxu0 0.0
    %546 = vmatpush1.msra.mxu0 0.0
    %547 = vmatprep.subr.mxu0 0.0
    %548 = vmatpush1.msra.mxu0 0.0
    %549 = vmatprep.subr.mxu0 0.0
    %550 = vmatpush1.msra.mxu0 0.0
    %551 = vmatprep.subr.mxu0 0.0
    %552 = vmatpush1.msra.mxu0 0.0
    %553 = vmatprep.subr.mxu0 0.0
    %554 = vmatpush1.msra.mxu0 0.0
    %555 = vmatprep.subr.mxu0 0.0
    %556 = vmatpush1.msra.mxu0 0.0
    %557 = vmatprep.subr.mxu0 0.0
    %558 = vmatpush1.msra.mxu0 0.0
    %559 = vmatprep.mubr.f32.mxu0 0.0
    %560 = vmatmul.mubr.f32.gmra.mrb[0].mxu0 %v448
    %v561 = vpop.f32.mrb[0].mxu0
    %v562 = vadd.f32 %v446, %v561
    %v563 = vpop.f32.mrb[0].mxu0
    %564 = vmatprep.mubr.f32.mxu0 0.0
    %565 = vmatmul.mubr.f32.gmra.mrb[0].mxu0 %v451
    %v566 = vpop.f32.mrb[0].mxu0
    %v567 = vadd.f32 %v446, %v566
    %v568 = vpop.f32.mrb[0].mxu0
    %569 = vmatprep.mubr.f32.mxu0 0.0
    %570 = vmatmul.mubr.f32.gmra.mrb[0].mxu0 %v454
    %v571 = vpop.f32.mrb[0].mxu0
    %v572 = vadd.f32 %v446, %v571
    %v573 = vpop.f32.mrb[0].mxu0
    %574 = vmatprep.mubr.f32.mxu0 0.0
    %575 = vmatmul.mubr.f32.gmra.mrb[0].mxu0 %v457
    %v576 = vpop.f32.mrb[0].mxu0
    %v577 = vadd.f32 %v446, %v576
    %v578 = vpop.f32.mrb[0].mxu0
    %579 = vmatprep.mubr.f32.mxu0 0.0
    %580 = vmatmul.mubr.f32.gmra.mrb[0].mxu0 %v460
    %v581 = vpop.f32.mrb[0].mxu0
    %v582 = vadd.f32 %v446, %v581
    %v583 = vpop.f32.mrb[0].mxu0
    %584 = vmatprep.mubr.f32.mxu0 0.0
    %585 = vmatmul.mubr.f32.gmra.mrb[0].mxu0 %v463
    %v586 = vpop.f32.mrb[0].mxu0
    %v587 = vadd.f32 %v446, %v586
    %v588 = vpop.f32.mrb[0].mxu0
    %589 = vmatprep.mubr.f32.mxu0 0.0
    %590 = vmatmul.mubr.f32.gmra.mrb[0].mxu0 %v466
    %v591 = vpop.f32.mrb[0].mxu0
    %v592 = vadd.f32 %v446, %v591
    %v593 = vpop.f32.mrb[0].mxu0
    %594 = vmatprep.mubr.f32.mxu0 0.0
    %595 = vmatmul.mubr.f32.gmra.mrb[0].mxu0 %v469
    %v596 = vpop.f32.mrb[0].mxu0
    %v597 = vadd.f32 %v446, %v596
    %v598 = vpop.f32.mrb[0].mxu0
    %599 = vmatprep.mubr.f32.mxu0 0.0
    %600 = vmatmul.mubr.f32.gmra.mrb[0].mxu0 %v472
    %v601 = vpop.f32.mrb[0].mxu0
    %v602 = vadd.f32 %v446, %v601
    %v603 = vpop.f32.mrb[0].mxu0
    %604 = vmatprep.mubr.f32.mxu0 0.0
    %605 = vmatmul.mubr.f32.gmra.mrb[0].mxu0 %v475
    %v606 = vpop.f32.mrb[0].mxu0
    %v607 = vadd.f32 %v446, %v606
    %v608 = vpop.f32.mrb[0].mxu0
    %609 = vmatprep.mubr.f32.mxu0 0.0
    %610 = vmatmul.mubr.f32.gmra.mrb[0].mxu0 %v478
    %v611 = vpop.f32.mrb[0].mxu0
    %v612 = vadd.f32 %v446, %v611
    %v613 = vpop.f32.mrb[0].mxu0
    %614 = vmatprep.mubr.f32.mxu0 0.0
    %615 = vmatmul.mubr.f32.gmra.mrb[0].mxu0 %v481
    %v616 = vpop.f32.mrb[0].mxu0
    %v617 = vadd.f32 %v446, %v616
    %v618 = vpop.f32.mrb[0].mxu0
    %619 = vmatprep.mubr.f32.mxu0 0.0
    %620 = vmatmul.mubr.f32.gmra.mrb[0].mxu0 %v484
    %v621 = vpop.f32.mrb[0].mxu0
    %v622 = vadd.f32 %v446, %v621
    %v623 = vpop.f32.mrb[0].mxu0
    %624 = vmatprep.mubr.f32.mxu0 0.0
    %625 = vmatmul.mubr.f32.gmra.mrb[0].mxu0 %v487
    %v626 = vpop.f32.mrb[0].mxu0
    %v627 = vadd.f32 %v446, %v626
    %v628 = vpop.f32.mrb[0].mxu0
    %629 = vmatprep.mubr.f32.mxu0 0.0
    %630 = vmatmul.mubr.f32.gmra.mrb[0].mxu0 %v490
    %v631 = vpop.f32.mrb[0].mxu0
    %v632 = vadd.f32 %v446, %v631
    %v633 = vpop.f32.mrb[0].mxu0
    %634 = vmatprep.mubr.f32.mxu0 0.0
    %635 = vmatmul.mubr.f32.gmra.mrb[0].mxu0 %v493
    %v636 = vpop.f32.mrb[0].mxu0
    %v637 = vadd.f32 %v446, %v636
    %v638 = vpop.f32.mrb[0].mxu0
    %639 = vdwg.mxu0
    %v640 = vmax.f32 %v562, 0.0
    %v641 = vmax.f32 %v567, 0.0
    %v642 = vmax.f32 %v572, 0.0
    %v643 = vmax.f32 %v577, 0.0
    %v644 = vmax.f32 %v582, 0.0
    %v645 = vmax.f32 %v587, 0.0
    %v646 = vmax.f32 %v592, 0.0
    %v647 = vmax.f32 %v597, 0.0
    %v648 = vmax.f32 %v602, 0.0
    %v649 = vmax.f32 %v607, 0.0
    %v650 = vmax.f32 %v612, 0.0
    %v651 = vmax.f32 %v617, 0.0
    %v652 = vmax.f32 %v622, 0.0
    %v653 = vmax.f32 %v627, 0.0
    %v654 = vmax.f32 %v632, 0.0
    %v655 = vmax.f32 %v637, 0.0
    %v656 = vsel %vm267, %v640, 0.0
    %v657 = vsel %vm267, %v641, 0.0
    %v658 = vadd.f32 %v656, %v657
    %v659 = vsel %vm267, %v642, 0.0
    %v660 = vadd.f32 %v658, %v659
    %v661 = vsel %vm267, %v643, 0.0
    %v662 = vadd.f32 %v660, %v661
    %v663 = vsel %vm267, %v644, 0.0
    %v664 = vadd.f32 %v662, %v663
    %v665 = vsel %vm267, %v645, 0.0
    %v666 = vadd.f32 %v664, %v665
    %v667 = vsel %vm267, %v646, 0.0
    %v668 = vadd.f32 %v666, %v667
    %v669 = vsel %vm267, %v647, 0.0
    %v670 = vadd.f32 %v668, %v669
    %v671 = vsel %vm267, %v648, 0.0
    %v672 = vadd.f32 %v670, %v671
    %v673 = vsel %vm267, %v649, 0.0
    %v674 = vadd.f32 %v672, %v673
    %v675 = vsel %vm267, %v650, 0.0
    %v676 = vadd.f32 %v674, %v675
    %v677 = vsel %vm267, %v651, 0.0
    %v678 = vadd.f32 %v676, %v677
    %v679 = vsel %vm267, %v652, 0.0
    %v680 = vadd.f32 %v678, %v679
    %v681 = vsel %vm267, %v653, 0.0
    %v682 = vadd.f32 %v680, %v681
    %v683 = vsel %vm267, %v654, 0.0
    %v684 = vadd.f32 %v682, %v683
    %v685 = vsel %vm267, %v655, 0.0
    %v686 = vadd.f32 %v684, %v685
    %v687 = vrot.slane %v686, 4
    %v688 = vadd.f32 %v686, %v687
    %v689 = vrot.slane %v688, 2
    %v690 = vadd.f32 %v688, %v689
    %v691 = vrot.slane %v690, 1
    %v692 = vadd.f32 %v690, %v691
    %v693 = vmul.f32 %v692, %v305
    %v694 = vsub.f32 %v640, %v693
    %v695 = vsub.f32 %v641, %v693
    %v696 = vsub.f32 %v642, %v693
    %v697 = vsub.f32 %v643, %v693
    %v698 = vsub.f32 %v644, %v693
    %v699 = vsub.f32 %v645, %v693
    %v700 = vsub.f32 %v646, %v693
    %v701 = vsub.f32 %v647, %v693
    %v702 = vsub.f32 %v648, %v693
    %v703 = vsub.f32 %v649, %v693
    %v704 = vsub.f32 %v650, %v693
    %v705 = vsub.f32 %v651, %v693
    %v706 = vsub.f32 %v652, %v693
    %v707 = vsub.f32 %v653, %v693
    %v708 = vsub.f32 %v654, %v693
    %v709 = vsub.f32 %v655, %v693
    %v710 = vmul.f32 %v694, %v694
    %v711 = vmul.f32 %v695, %v695
    %v712 = vmul.f32 %v696, %v696
    %v713 = vmul.f32 %v697, %v697
    %v714 = vmul.f32 %v698, %v698
    %v715 = vmul.f32 %v699, %v699
    %v716 = vmul.f32 %v700, %v700
    %v717 = vmul.f32 %v701, %v701
    %v718 = vmul.f32 %v702, %v702
    %v719 = vmul.f32 %v703, %v703
    %v720 = vmul.f32 %v704, %v704
    %v721 = vmul.f32 %v705, %v705
    %v722 = vmul.f32 %v706, %v706
    %v723 = vmul.f32 %v707, %v707
    %v724 = vmul.f32 %v708, %v708
    %v725 = vmul.f32 %v709, %v709
    %v726 = vsel %vm267, %v710, 0.0
    %v727 = vsel %vm267, %v711, 0.0
    %v728 = vadd.f32 %v726, %v727
    %v729 = vsel %vm267, %v712, 0.0
    %v730 = vadd.f32 %v728, %v729
    %v731 = vsel %vm267, %v713, 0.0
    %v732 = vadd.f32 %v730, %v731
    %v733 = vsel %vm267, %v714, 0.0
    %v734 = vadd.f32 %v732, %v733
    %v735 = vsel %vm267, %v715, 0.0
    %v736 = vadd.f32 %v734, %v735
    %v737 = vsel %vm267, %v716, 0.0
    %v738 = vadd.f32 %v736, %v737
    %v739 = vsel %vm267, %v717, 0.0
    %v740 = vadd.f32 %v738, %v739
    %v741 = vsel %vm267, %v718, 0.0
    %v742 = vadd.f32 %v740, %v741
    %v743 = vsel %vm267, %v719, 0.0
    %v744 = vadd.f32 %v742, %v743
    %v745 = vsel %vm267, %v720, 0.0
    %v746 = vadd.f32 %v744, %v745
    %v747 = vsel %vm267, %v721, 0.0
    %v748 = vadd.f32 %v746, %v747
    %v749 = vsel %vm267, %v722, 0.0
    %v750 = vadd.f32 %v748, %v749
    %v751 = vsel %vm267, %v723, 0.0
    %v752 = vadd.f32 %v750, %v751
    %v753 = vsel %vm267, %v724, 0.0
    %v754 = vadd.f32 %v752, %v753
    %v755 = vsel %vm267, %v725, 0.0
    %v756 = vadd.f32 %v754, %v755
    %v757 = vrot.slane %v756, 4
    %v758 = vadd.f32 %v756, %v757
    %v759 = vrot.slane %v758, 2
    %v760 = vadd.f32 %v758, %v759
    %v761 = vrot.slane %v760, 1
    %v762 = vadd.f32 %v760, %v761
    %v763 = vmul.f32 %v762, %v305
    %v764 = vadd.f32 %v763, 1e-05
    %v765 = vrsqrt.pop %v764
    %v766 = vmul.f32 %v694, %v765
    %v767 = vmul.f32 %v695, %v765
    %v768 = vmul.f32 %v696, %v765
    %v769 = vmul.f32 %v697, %v765
    %v770 = vmul.f32 %v698, %v765
    %v771 = vmul.f32 %v699, %v765
    %v772 = vmul.f32 %v700, %v765
    %v773 = vmul.f32 %v701, %v765
    %v774 = vmul.f32 %v702, %v765
    %v775 = vmul.f32 %v703, %v765
    %v776 = vmul.f32 %v704, %v765
    %v777 = vmul.f32 %v705, %v765
    %v778 = vmul.f32 %v706, %v765
    %v779 = vmul.f32 %v707, %v765
    %v780 = vmul.f32 %v708, %v765
    %v781 = vmul.f32 %v709, %v765
    %v782 = vlaneseq
    %v783 = vshrl.u32 %v782, 7
    %v784 = vsub.s32 0, %v783
    %v785 = vrot.slane %v25, %v784
    %v786 = vmul.f32 %v766, %v785
    %v787 = vmul.f32 %v767, %v785
    %v788 = vmul.f32 %v768, %v785
    %v789 = vmul.f32 %v769, %v785
    %v790 = vmul.f32 %v770, %v785
    %v791 = vmul.f32 %v771, %v785
    %v792 = vmul.f32 %v772, %v785
    %v793 = vmul.f32 %v773, %v785
    %v794 = vmul.f32 %v774, %v785
    %v795 = vmul.f32 %v775, %v785
    %v796 = vmul.f32 %v776, %v785
    %v797 = vmul.f32 %v777, %v785
    %v798 = vmul.f32 %v778, %v785
    %v799 = vmul.f32 %v779, %v785
    %v800 = vmul.f32 %v780, %v785
    %v801 = vmul.f32 %v781, %v785
    %v802 = vlaneseq
    %v803 = vshrl.u32 %v802, 7
    %v804 = vsub.s32 0, %v803
    %v805 = vrot.slane %v26, %v804
    %v806 = vadd.f32 %v786, %v805
    %v807 = vadd.f32 %v787, %v805
    %v808 = vadd.f32 %v788, %v805
    %v809 = vadd.f32 %v789, %v805
    %v810 = vadd.f32 %v790, %v805
    %v811 = vadd.f32 %v791, %v805
    %v812 = vadd.f32 %v792, %v805
    %v813 = vadd.f32 %v793, %v805
    %v814 = vadd.f32 %v794, %v805
    %v815 = vadd.f32 %v795, %v805
    %v816 = vadd.f32 %v796, %v805
    %v817 = vadd.f32 %v797, %v805
    %v818 = vadd.f32 %v798, %v805
    %v819 = vadd.f32 %v799, %v805
    %v820 = vadd.f32 %v800, %v805
    %v821 = vadd.f32 %v801, %v805
    %v822 = vld [vmem:[%s3] sm:$0xff]
    %v823 = vld [vmem:[%s3 + $0x8] sm:$0xff]
    %v824 = vld [vmem:[%s3 + $0x10] sm:$0xff]
    %v825 = vld [vmem:[%s3 + $0x18] sm:$0xff]
    %v826 = vld [vmem:[%s3 + $0x20] sm:$0xff]
    %v827 = vld [vmem:[%s3 + $0x28] sm:$0xff]
    %v828 = vld [vmem:[%s3 + $0x30] sm:$0xff]
    %v829 = vld [vmem:[%s3 + $0x38] sm:$0xff]
    %v830 = vlaneseq
    %v831 = vshrl.u32 %v830, 7
    %v832 = vsub.s32 0, %v831
    %v833 = vrot.slane %v27, %v832
    %v835 = vsel %vm267, %v806, 0
    %v838 = vsel %vm267, %v807, 0
    %v841 = vsel %vm267, %v808, 0
    %v844 = vsel %vm267, %v809, 0
    %v847 = vsel %vm267, %v810, 0
    %v850 = vsel %vm267, %v811, 0
    %v853 = vsel %vm267, %v812, 0
    %v856 = vsel %vm267, %v813, 0
    %v859 = vsel %vm267, %v814, 0
    %v862 = vsel %vm267, %v815, 0
    %v865 = vsel %vm267, %v816, 0
    %v868 = vsel %vm267, %v817, 0
    %v871 = vsel %vm267, %v818, 0
    %v874 = vsel %vm267, %v819, 0
    %v877 = vsel %vm267, %v820, 0
    %v880 = vsel %vm267, %v821, 0
    %882 = vmatprep.subr.mxu0 0.0
    %883 = vmatpush1.msra.mxu0 %v822
    %884 = vmatprep.subr.mxu0 0.0
    %885 = vmatpush1.msra.mxu0 %v823
    %886 = vmatprep.subr.mxu0 0.0
    %887 = vmatpush1.msra.mxu0 %v824
    %888 = vmatprep.subr.mxu0 0.0
    %889 = vmatpush1.msra.mxu0 %v825
    %890 = vmatprep.subr.mxu0 0.0
    %891 = vmatpush1.msra.mxu0 %v826
    %892 = vmatprep.subr.mxu0 0.0
    %893 = vmatpush1.msra.mxu0 %v827
    %894 = vmatprep.subr.mxu0 0.0
    %895 = vmatpush1.msra.mxu0 %v828
    %896 = vmatprep.subr.mxu0 0.0
    %897 = vmatpush1.msra.mxu0 %v829
    %898 = vmatprep.subr.mxu0 0.0
    %899 = vmatpush1.msra.mxu0 0.0
    %900 = vmatprep.subr.mxu0 0.0
    %901 = vmatpush1.msra.mxu0 0.0
    %902 = vmatprep.subr.mxu0 0.0
    %903 = vmatpush1.msra.mxu0 0.0
    %904 = vmatprep.subr.mxu0 0.0
    %905 = vmatpush1.msra.mxu0 0.0
    %906 = vmatprep.subr.mxu0 0.0
    %907 = vmatpush1.msra.mxu0 0.0
    %908 = vmatprep.subr.mxu0 0.0
    %909 = vmatpush1.msra.mxu0 0.0
    %910 = vmatprep.subr.mxu0 0.0
    %911 = vmatpush1.msra.mxu0 0.0
    %912 = vmatprep.subr.mxu0 0.0
    %913 = vmatpush1.msra.mxu0 0.0
    %914 = vmatprep.subr.mxu0 0.0
    %915 = vmatpush1.msra.mxu0 0.0
    %916 = vmatprep.subr.mxu0 0.0
    %917 = vmatpush1.msra.mxu0 0.0
    %918 = vmatprep.subr.mxu0 0.0
    %919 = vmatpush1.msra.mxu0 0.0
    %920 = vmatprep.subr.mxu0 0.0
    %921 = vmatpush1.msra.mxu0 0.0
    %922 = vmatprep.subr.mxu0 0.0
    %923 = vmatpush1.msra.mxu0 0.0
    %924 = vmatprep.subr.mxu0 0.0
    %925 = vmatpush1.msra.mxu0 0.0
    %926 = vmatprep.subr.mxu0 0.0
    %927 = vmatpush1.msra.mxu0 0.0
    %928 = vmatprep.subr.mxu0 0.0
    %929 = vmatpush1.msra.mxu0 0.0
    %930 = vmatprep.subr.mxu0 0.0
    %931 = vmatpush1.msra.mxu0 0.0
    %932 = vmatprep.subr.mxu0 0.0
    %933 = vmatpush1.msra.mxu0 0.0
    %934 = vmatprep.subr.mxu0 0.0
    %935 = vmatpush1.msra.mxu0 0.0
    %936 = vmatprep.subr.mxu0 0.0
    %937 = vmatpush1.msra.mxu0 0.0
    %938 = vmatprep.subr.mxu0 0.0
    %939 = vmatpush1.msra.mxu0 0.0
    %940 = vmatprep.subr.mxu0 0.0
    %941 = vmatpush1.msra.mxu0 0.0
    %942 = vmatprep.subr.mxu0 0.0
    %943 = vmatpush1.msra.mxu0 0.0
    %944 = vmatprep.subr.mxu0 0.0
    %945 = vmatpush1.msra.mxu0 0.0
    %946 = vmatprep.mubr.f32.mxu0 0.0
    %947 = vmatmul.mubr.f32.gmra.mrb[0].mxu0 %v835
    %v948 = vpop.f32.mrb[0].mxu0
    %v949 = vadd.f32 %v833, %v948
    %v950 = vpop.f32.mrb[0].mxu0
    %951 = vmatprep.mubr.f32.mxu0 0.0
    %952 = vmatmul.mubr.f32.gmra.mrb[0].mxu0 %v838
    %v953 = vpop.f32.mrb[0].mxu0
    %v954 = vadd.f32 %v833, %v953
    %v955 = vpop.f32.mrb[0].mxu0
    %956 = vmatprep.mubr.f32.mxu0 0.0
    %957 = vmatmul.mubr.f32.gmra.mrb[0].mxu0 %v841
    %v958 = vpop.f32.mrb[0].mxu0
    %v959 = vadd.f32 %v833, %v958
    %v960 = vpop.f32.mrb[0].mxu0
    %961 = vmatprep.mubr.f32.mxu0 0.0
    %962 = vmatmul.mubr.f32.gmra.mrb[0].mxu0 %v844
    %v963 = vpop.f32.mrb[0].mxu0
    %v964 = vadd.f32 %v833, %v963
    %v965 = vpop.f32.mrb[0].mxu0
    %966 = vmatprep.mubr.f32.mxu0 0.0
    %967 = vmatmul.mubr.f32.gmra.mrb[0].mxu0 %v847
    %v968 = vpop.f32.mrb[0].mxu0
    %v969 = vadd.f32 %v833, %v968
    %v970 = vpop.f32.mrb[0].mxu0
    %971 = vmatprep.mubr.f32.mxu0 0.0
    %972 = vmatmul.mubr.f32.gmra.mrb[0].mxu0 %v850
    %v973 = vpop.f32.mrb[0].mxu0
    %v974 = vadd.f32 %v833, %v973
    %v975 = vpop.f32.mrb[0].mxu0
    %976 = vmatprep.mubr.f32.mxu0 0.0
    %977 = vmatmul.mubr.f32.gmra.mrb[0].mxu0 %v853
    %v978 = vpop.f32.mrb[0].mxu0
    %v979 = vadd.f32 %v833, %v978
    %v980 = vpop.f32.mrb[0].mxu0
    %981 = vmatprep.mubr.f32.mxu0 0.0
    %982 = vmatmul.mubr.f32.gmra.mrb[0].mxu0 %v856
    %v983 = vpop.f32.mrb[0].mxu0
    %v984 = vadd.f32 %v833, %v983
    %v985 = vpop.f32.mrb[0].mxu0
    %986 = vmatprep.mubr.f32.mxu0 0.0
    %987 = vmatmul.mubr.f32.gmra.mrb[0].mxu0 %v859
    %v988 = vpop.f32.mrb[0].mxu0
    %v989 = vadd.f32 %v833, %v988
    %v990 = vpop.f32.mrb[0].mxu0
    %991 = vmatprep.mubr.f32.mxu0 0.0
    %992 = vmatmul.mubr.f32.gmra.mrb[0].mxu0 %v862
    %v993 = vpop.f32.mrb[0].mxu0
    %v994 = vadd.f32 %v833, %v993
    %v995 = vpop.f32.mrb[0].mxu0
    %996 = vmatprep.mubr.f32.mxu0 0.0
    %997 = vmatmul.mubr.f32.gmra.mrb[0].mxu0 %v865
    %v998 = vpop.f32.mrb[0].mxu0
    %v999 = vadd.f32 %v833, %v998
    %v1000 = vpop.f32.mrb[0].mxu0
    %1001 = vmatprep.mubr.f32.mxu0 0.0
    %1002 = vmatmul.mubr.f32.gmra.mrb[0].mxu0 %v868
    %v1003 = vpop.f32.mrb[0].mxu0
    %v1004 = vadd.f32 %v833, %v1003
    %v1005 = vpop.f32.mrb[0].mxu0
    %1006 = vmatprep.mubr.f32.mxu0 0.0
    %1007 = vmatmul.mubr.f32.gmra.mrb[0].mxu0 %v871
    %v1008 = vpop.f32.mrb[0].mxu0
    %v1009 = vadd.f32 %v833, %v1008
    %v1010 = vpop.f32.mrb[0].mxu0
    %1011 = vmatprep.mubr.f32.mxu0 0.0
    %1012 = vmatmul.mubr.f32.gmra.mrb[0].mxu0 %v874
    %v1013 = vpop.f32.mrb[0].mxu0
    %v1014 = vadd.f32 %v833, %v1013
    %v1015 = vpop.f32.mrb[0].mxu0
    %1016 = vmatprep.mubr.f32.mxu0 0.0
    %1017 = vmatmul.mubr.f32.gmra.mrb[0].mxu0 %v877
    %v1018 = vpop.f32.mrb[0].mxu0
    %v1019 = vadd.f32 %v833, %v1018
    %v1020 = vpop.f32.mrb[0].mxu0
    %1021 = vmatprep.mubr.f32.mxu0 0.0
    %1022 = vmatmul.mubr.f32.gmra.mrb[0].mxu0 %v880
    %v1023 = vpop.f32.mrb[0].mxu0
    %v1024 = vadd.f32 %v833, %v1023
    %v1025 = vpop.f32.mrb[0].mxu0
    %1026 = vdwg.mxu0
    %v1027 = vtanh.pop %v949
    %v1028 = vtanh.pop %v954
    %v1029 = vtanh.pop %v959
    %v1030 = vtanh.pop %v964
    %v1031 = vtanh.pop %v969
    %v1032 = vtanh.pop %v974
    %v1033 = vtanh.pop %v979
    %v1034 = vtanh.pop %v984
    %v1035 = vtanh.pop %v989
    %v1036 = vtanh.pop %v994
    %v1037 = vtanh.pop %v999
    %v1038 = vtanh.pop %v1004
    %v1039 = vtanh.pop %v1009
    %v1040 = vtanh.pop %v1014
    %v1041 = vtanh.pop %v1019
    %v1042 = vtanh.pop %v1024
    %v1043 = vlaneseq
    %v1044 = vand.u32 %v1043, 127
    %vm1045 = vcmp.eq.s32.totalorder %v1044, 4
    %v1046 = vsel %vm1045, 1, 0
    %vm1047 = vcmp.eq.s32.totalorder %v1046, 1
    %v1048 = vsel %vm1047, %v1027, 0.0
    %v1049 = vsel %vm1047, %v1028, 0.0
    %v1050 = vsel %vm1047, %v1029, 0.0
    %v1051 = vsel %vm1047, %v1030, 0.0
    %v1052 = vsel %vm1047, %v1031, 0.0
    %v1053 = vsel %vm1047, %v1032, 0.0
    %v1054 = vsel %vm1047, %v1033, 0.0
    %v1055 = vsel %vm1047, %v1034, 0.0
    %v1056 = vsel %vm1047, %v1035, 0.0
    %v1057 = vsel %vm1047, %v1036, 0.0
    %v1058 = vsel %vm1047, %v1037, 0.0
    %v1059 = vsel %vm1047, %v1038, 0.0
    %v1060 = vsel %vm1047, %v1039, 0.0
    %v1061 = vsel %vm1047, %v1040, 0.0
    %v1062 = vsel %vm1047, %v1041, 0.0
    %v1063 = vsel %vm1047, %v1042, 0.0
    %1064 = vadd.xlane.f32.xlu0 %v1048
    %v1065 = vpop.xlane.xlu0 %1064
    %1066 = vadd.xlane.f32.xlu0 %v1049
    %v1067 = vpop.xlane.xlu0 %1066
    %1068 = vadd.xlane.f32.xlu0 %v1050
    %v1069 = vpop.xlane.xlu0 %1068
    %1070 = vadd.xlane.f32.xlu0 %v1051
    %v1071 = vpop.xlane.xlu0 %1070
    %1072 = vadd.xlane.f32.xlu0 %v1052
    %v1073 = vpop.xlane.xlu0 %1072
    %1074 = vadd.xlane.f32.xlu0 %v1053
    %v1075 = vpop.xlane.xlu0 %1074
    %1076 = vadd.xlane.f32.xlu0 %v1054
    %v1077 = vpop.xlane.xlu0 %1076
    %1078 = vadd.xlane.f32.xlu0 %v1055
    %v1079 = vpop.xlane.xlu0 %1078
    %1080 = vadd.xlane.f32.xlu0 %v1056
    %v1081 = vpop.xlane.xlu0 %1080
    %1082 = vadd.xlane.f32.xlu0 %v1057
    %v1083 = vpop.xlane.xlu0 %1082
    %1084 = vadd.xlane.f32.xlu0 %v1058
    %v1085 = vpop.xlane.xlu0 %1084
    %1086 = vadd.xlane.f32.xlu0 %v1059
    %v1087 = vpop.xlane.xlu0 %1086
    %1088 = vadd.xlane.f32.xlu0 %v1060
    %v1089 = vpop.xlane.xlu0 %1088
    %1090 = vadd.xlane.f32.xlu0 %v1061
    %v1091 = vpop.xlane.xlu0 %1090
    %1092 = vadd.xlane.f32.xlu0 %v1062
    %v1093 = vpop.xlane.xlu0 %1092
    %1094 = vadd.xlane.f32.xlu0 %v1063
    %v1095 = vpop.xlane.xlu0 %1094
    %1096 = vadd.xlane.f32.xlu0 %v1027
    %v1097 = vpop.xlane.xlu0 %1096
    %1098 = vadd.xlane.f32.xlu0 %v1028
    %v1099 = vpop.xlane.xlu0 %1098
    %1100 = vadd.xlane.f32.xlu0 %v1029
    %v1101 = vpop.xlane.xlu0 %1100
    %1102 = vadd.xlane.f32.xlu0 %v1030
    %v1103 = vpop.xlane.xlu0 %1102
    %1104 = vadd.xlane.f32.xlu0 %v1031
    %v1105 = vpop.xlane.xlu0 %1104
    %1106 = vadd.xlane.f32.xlu0 %v1032
    %v1107 = vpop.xlane.xlu0 %1106
    %1108 = vadd.xlane.f32.xlu0 %v1033
    %v1109 = vpop.xlane.xlu0 %1108
    %1110 = vadd.xlane.f32.xlu0 %v1034
    %v1111 = vpop.xlane.xlu0 %1110
    %1112 = vadd.xlane.f32.xlu0 %v1035
    %v1113 = vpop.xlane.xlu0 %1112
    %1114 = vadd.xlane.f32.xlu0 %v1036
    %v1115 = vpop.xlane.xlu0 %1114
    %1116 = vadd.xlane.f32.xlu0 %v1037
    %v1117 = vpop.xlane.xlu0 %1116
    %1118 = vadd.xlane.f32.xlu0 %v1038
    %v1119 = vpop.xlane.xlu0 %1118
    %1120 = vadd.xlane.f32.xlu0 %v1039
    %v1121 = vpop.xlane.xlu0 %1120
    %1122 = vadd.xlane.f32.xlu0 %v1040
    %v1123 = vpop.xlane.xlu0 %1122
    %1124 = vadd.xlane.f32.xlu0 %v1041
    %v1125 = vpop.xlane.xlu0 %1124
    %1126 = vadd.xlane.f32.xlu0 %v1042
    %v1127 = vpop.xlane.xlu0 %1126
    %v1128 = vsub.f32 %v1097, %v1065
    %v1129 = vsub.f32 %v1099, %v1067
    %v1130 = vsub.f32 %v1101, %v1069
    %v1131 = vsub.f32 %v1103, %v1071
    %v1132 = vsub.f32 %v1105, %v1073
    %v1133 = vsub.f32 %v1107, %v1075
    %v1134 = vsub.f32 %v1109, %v1077
    %v1135 = vsub.f32 %v1111, %v1079
    %v1136 = vsub.f32 %v1113, %v1081
    %v1137 = vsub.f32 %v1115, %v1083
    %v1138 = vsub.f32 %v1117, %v1085
    %v1139 = vsub.f32 %v1119, %v1087
    %v1140 = vsub.f32 %v1121, %v1089
    %v1141 = vsub.f32 %v1123, %v1091
    %v1142 = vsub.f32 %v1125, %v1093
    %v1143 = vsub.f32 %v1127, %v1095
    %v1144 = vmul.f32 %v1128, 0.25
    %v1145 = vmul.f32 %v1129, 0.25
    %v1146 = vmul.f32 %v1130, 0.25
    %v1147 = vmul.f32 %v1131, 0.25
    %v1148 = vmul.f32 %v1132, 0.25
    %v1149 = vmul.f32 %v1133, 0.25
    %v1150 = vmul.f32 %v1134, 0.25
    %v1151 = vmul.f32 %v1135, 0.25
    %v1152 = vmul.f32 %v1136, 0.25
    %v1153 = vmul.f32 %v1137, 0.25
    %v1154 = vmul.f32 %v1138, 0.25
    %v1155 = vmul.f32 %v1139, 0.25
    %v1156 = vmul.f32 %v1140, 0.25
    %v1157 = vmul.f32 %v1141, 0.25
    %v1158 = vmul.f32 %v1142, 0.25
    %v1159 = vmul.f32 %v1143, 0.25
    %v1160 = vsub.f32 %v1065, %v1144
    %v1161 = vsub.f32 %v1067, %v1145
    %v1162 = vsub.f32 %v1069, %v1146
    %v1163 = vsub.f32 %v1071, %v1147
    %v1164 = vsub.f32 %v1073, %v1148
    %v1165 = vsub.f32 %v1075, %v1149
    %v1166 = vsub.f32 %v1077, %v1150
    %v1167 = vsub.f32 %v1079, %v1151
    %v1168 = vsub.f32 %v1081, %v1152
    %v1169 = vsub.f32 %v1083, %v1153
    %v1170 = vsub.f32 %v1085, %v1154
    %v1171 = vsub.f32 %v1087, %v1155
    %v1172 = vsub.f32 %v1089, %v1156
    %v1173 = vsub.f32 %v1091, %v1157
    %v1174 = vsub.f32 %v1093, %v1158
    %v1175 = vsub.f32 %v1095, %v1159
    %v1176 = vadd.f32 %v1160, %v1027
    %v1177 = vadd.f32 %v1161, %v1028
    %v1178 = vadd.f32 %v1162, %v1029
    %v1179 = vadd.f32 %v1163, %v1030
    %v1180 = vadd.f32 %v1164, %v1031
    %v1181 = vadd.f32 %v1165, %v1032
    %v1182 = vadd.f32 %v1166, %v1033
    %v1183 = vadd.f32 %v1167, %v1034
    %v1184 = vadd.f32 %v1168, %v1035
    %v1185 = vadd.f32 %v1169, %v1036
    %v1186 = vadd.f32 %v1170, %v1037
    %v1187 = vadd.f32 %v1171, %v1038
    %v1188 = vadd.f32 %v1172, %v1039
    %v1189 = vadd.f32 %v1173, %v1040
    %v1190 = vadd.f32 %v1174, %v1041
    %v1191 = vadd.f32 %v1175, %v1042
    %1192 = vst [vmem:[#allocation2] sm:$0xff] %v1176
    %1193 = vst [vmem:[#allocation2 + $0x8] sm:$0xff] %v1177
    %1194 = vst [vmem:[#allocation2 + $0x10] sm:$0xff] %v1178
    %1195 = vst [vmem:[#allocation2 + $0x18] sm:$0xff] %v1179
    %1196 = vst [vmem:[#allocation2 + $0x20] sm:$0xff] %v1180
    %1197 = vst [vmem:[#allocation2 + $0x28] sm:$0xff] %v1181
    %1198 = vst [vmem:[#allocation2 + $0x30] sm:$0xff] %v1182
    %1199 = vst [vmem:[#allocation2 + $0x38] sm:$0xff] %v1183
    %1200 = vst [vmem:[#allocation2 + $0x40] sm:$0xff] %v1184
    %1201 = vst [vmem:[#allocation2 + $0x48] sm:$0xff] %v1185
    %1202 = vst [vmem:[#allocation2 + $0x50] sm:$0xff] %v1186
    %1203 = vst [vmem:[#allocation2 + $0x58] sm:$0xff] %v1187
    %1204 = vst [vmem:[#allocation2 + $0x60] sm:$0xff] %v1188
    %1205 = vst [vmem:[#allocation2 + $0x68] sm:$0xff] %v1189
    %1206 = vst [vmem:[#allocation2 + $0x70] sm:$0xff] %v1190
    %1207 = vst [vmem:[#allocation2 + $0x78] sm:$0xff] %v1191
    // Predicated region
    $region22: #{tpu_custom_call.1} parent=1 // pred_check
      _
    $region23: #{tpu_custom_call.1} parent=1 // pred_check_branch
      %1209 = sbr.rel (0) target = $region25
    $region24: #{tpu_custom_call.1} parent=1 // pred_region
      %s1211 = ssub.s32 2048, 2048
      %1212 = vsyncadd [#allocation3], %s1211
      %s1213 = sshll.u32 [#allocation2], 4
      %s1214 = int_to_ptr.vmem [resolvable:$true] %s1213
      %1219 = dma.vmem_to_hbm [thread:$0]  %s1214, 2048, %s5, [#allocation3], 128, 128, 8
    $region25: #{tpu_custom_call.1} parent=1 // pred_fallthru
      _
    // Predicated region
    $region26: #{tpu_custom_call.1} parent=1 // pred_check
      _
    $region27: #{tpu_custom_call.1} parent=1 // pred_check_branch
      %1221 = sbr.rel (0) target = $region29
    $region28: #{tpu_custom_call.1} parent=1 // pred_region
      %1222 = dma.done [#allocation3], 2048
    $region29: #{tpu_custom_call.1} parent=1 // pred_fallthru
      _
    %1223 = vsyncpa [#allocation3], 1

</llo_original>
